<compile_context>
chip_gen: v5e
topology: v5e:2x2
jax: 0.10.0
libtpu: 0.0.40
codegen_flags: <defaults>
</compile_context>

<pallas_src>
import jax
import jax.numpy as jnp
from jax import lax
from jax.experimental import pallas as pl
from jax.experimental.pallas import tpu as pltpu

F_IN = 30
F_HID = 50


def _round_up(n, m):
    return ((n + m - 1) // m) * m


def _make_ff_kernel(compute_dtype):
    def _ff_kernel(x_ref, w1_ref, b1_ref, w2_ref, b2_ref, o_ref):
        # x_ref: (tb, 30) natural layout, w1_ref: (50, 30),
        # b1_ref: (50, 1), w2_ref: (50, 1), b2_ref: (1, 1), o_ref: (1, tb)
        x = x_ref[...]
        w1 = w1_ref[...]
        if compute_dtype is not None:
            # Optional reduced-precision matmul (f32 accumulation); mainly a
            # v7x MXU-pass win.  Off by default to keep exact f32 semantics.
            x = x.astype(compute_dtype)
            w1 = w1.astype(compute_dtype)
        # Layer 1 on the MXU: contract dim 1 of both operands (W1 @ x^T),
        # producing h with batch on the lane axis: (50, tb).
        h = lax.dot_general(
            w1, x,
            dimension_numbers=(((1,), (1,)), ((), ())),
            preferred_element_type=jnp.float32)
        h = jnp.maximum(h + b1_ref[...], 0.0)                   # ReLU, (50, tb)
        # Layer 2 (N=1): VPU multiply + XLU sublane reduce, no MXU matmul.
        y = jnp.sum(h * w2_ref[...], axis=0, keepdims=True) + b2_ref[...]  # (1, tb)
        o_ref[...] = jnp.maximum(y, 0.0).astype(o_ref.dtype)    # ReLU
    return _ff_kernel


def feed_forward(x, w1, b1, w2, b2, *, block_b=16384, compute_dtype=None,
                 small_batch_fallback=False):
    """Forward pass.

    x:  (B, 30) f32   (natural PyTorch layout; streamed as-is, no transpose/pad)
    w1: (50, 30) f32  (PyTorch (out, in) convention)
    b1: (50,)    f32
    w2: (1, 50)  f32
    b2: (1,)     f32
    returns (B, 1) f32
    """
    B = x.shape[0]

    # Optional fast path: at tiny B the fused XLA version beats any kernel
    # launch.  Off by default so callers/tests exercise the Pallas path.
    if small_batch_fallback and B < 2048:
        return reference_forward(x, w1, b1, w2, b2)

    # Batch tile: multiple of 128 (lane-dense output blocks), capped at
    # block_b, and capped at ceil(B/2) so the parallel grid has >= 2 steps
    # whenever B allows it (v7x: 2 TensorCores).  VMEM per x buffer is
    # tb/8 * 4 KiB (30 lanes pad to 128); tb=16384 -> ~8 MiB, x2 buffers
    # = 16 MiB, comfortably inside every generation's budget.
    tb = min(_round_up(block_b, 128), _round_up(pl.cdiv(B, 2), 128))
    tb = max(tb, 128)
    n_tiles = pl.cdiv(B, tb)

    # Tiny parameter reshapes (hundreds of bytes; negligible).
    b1c = b1.reshape(F_HID, 1)     # (50, 1)
    w2c = w2.reshape(F_HID, 1)     # (50, 1) column of W2
    b2c = b2.reshape(1, 1)         # (1, 1)

    flops = 2 * B * (F_IN * F_HID + F_HID)
    bytes_accessed = (B * F_IN + B) * 4 + (w1.size + b1.size + w2.size + b2.size) * 4

    outT = pl.pallas_call(
        _make_ff_kernel(compute_dtype),
        out_shape=jax.ShapeDtypeStruct((1, B), jnp.float32),
        grid=(n_tiles,),
        in_specs=[
            pl.BlockSpec((tb, F_IN), lambda i: (i, 0)),      # x tile (streamed)
            pl.BlockSpec((F_HID, F_IN), lambda i: (0, 0)),   # W1 (resident)
            pl.BlockSpec((F_HID, 1), lambda i: (0, 0)),      # b1 (resident)
            pl.BlockSpec((F_HID, 1), lambda i: (0, 0)),      # w2 col (resident)
            pl.BlockSpec((1, 1), lambda i: (0, 0)),          # b2 (resident)
        ],
        out_specs=pl.BlockSpec((1, tb), lambda i: (0, i)),   # lane-dense output
        compiler_params=pltpu.CompilerParams(
            dimension_semantics=("parallel",),
            vmem_limit_bytes=48 * 1024 * 1024,
        ),
        cost_estimate=pl.CostEstimate(
            flops=flops, transcendentals=0, bytes_accessed=bytes_accessed),
    )(x, w1, b1c, w2c, b2c)

    # (1, B) -> (B, 1); same linear order, so this is effectively free.
    return outT.reshape(B, 1)


def init_params(key):
    """Deterministic init matching nn.Linear(30,50)/nn.Linear(50,1) shapes."""
    k1, k2, k3, k4 = jax.random.split(key, 4)
    bound1 = 1.0 / jnp.sqrt(30.0)
    bound2 = 1.0 / jnp.sqrt(50.0)
    w1 = jax.random.uniform(k1, (F_HID, F_IN), jnp.float32, -bound1, bound1)
    b1 = jax.random.uniform(k2, (F_HID,), jnp.float32, -bound1, bound1)
    w2 = jax.random.uniform(k3, (1, F_HID), jnp.float32, -bound2, bound2)
    b2 = jax.random.uniform(k4, (1,), jnp.float32, -bound2, bound2)
    return w1, b1, w2, b2


def reference_forward(x, w1, b1, w2, b2):
    h = jnp.maximum(x @ w1.T + b1, 0.0)
    return jnp.maximum(h @ w2.T + b2, 0.0)


# TODO(synk): training-side pieces of the module (MSELoss, Adam step,
# backward/validate loops) are host-level training utilities, not part of the
# forward pass, and are intentionally not implemented as kernels.

if __name__ == "__main__":
    key = jax.random.PRNGKey(0)
    kx, kp, kx2 = jax.random.split(key, 3)
    w1, b1, w2, b2 = init_params(kp)

    # Small batch (single tile, ragged block) — as in the spec's usage.
    B1 = 8
    x_small = jax.random.normal(kx, (B1, F_IN), jnp.float32)
    out_small = jax.block_until_ready(feed_forward(x_small, w1, b1, w2, b2))
    ref_small = reference_forward(x_small, w1, b1, w2, b2)
    assert out_small.shape == (B1, 1), out_small.shape
    assert jnp.allclose(out_small, ref_small, atol=1e-5, rtol=1e-5), \
        "mismatch vs reference (small batch)"

    # Multi-tile batch with a ragged final block (exercises the masked
    # boundary-block path and the >=2-step parallel grid).
    B2 = 300
    x_med = jax.random.normal(kx2, (B2, F_IN), jnp.float32)
    out_med = jax.block_until_ready(feed_forward(x_med, w1, b1, w2, b2))
    ref_med = reference_forward(x_med, w1, b1, w2, b2)
    assert out_med.shape == (B2, 1), out_med.shape
    assert jnp.allclose(out_med, ref_med, atol=1e-5, rtol=1e-5), \
        "mismatch vs reference (multi-tile batch)"

    print("KERNEL_OK")
</pallas_src>

<mosaic_0001>
module attributes {stable_mosaic.version = 11 : i64} {
  func.func @_ff_kernel(%arg0: i32, %arg1: memref<128x30xf32, #tpu.memory_space<vmem>>, %arg2: memref<50x30xf32, #tpu.memory_space<vmem>>, %arg3: memref<50x1xf32, #tpu.memory_space<vmem>>, %arg4: memref<50x1xf32, #tpu.memory_space<vmem>>, %arg5: memref<1x1xf32, #tpu.memory_space<vmem>>, %arg6: memref<1x128xf32, #tpu.memory_space<vmem>>) attributes {dimension_semantics = [#tpu.dimension_semantics<parallel>], iteration_bounds = array<i64: 1>, scalar_prefetch = 0 : i64, scratch_operands = 0 : i64, tpu.core_type = #tpu.core_type<tc>, window_params = [{transform_indices = @transform_0, window_bounds = array<i64: 128, 30>}, {pipeline_mode = #tpu.pipeline_mode<synchronous>, transform_indices = @transform_1, window_bounds = array<i64: 50, 30>}, {pipeline_mode = #tpu.pipeline_mode<synchronous>, transform_indices = @transform_2, window_bounds = array<i64: 50, 1>}, {pipeline_mode = #tpu.pipeline_mode<synchronous>, transform_indices = @transform_3, window_bounds = array<i64: 50, 1>}, {pipeline_mode = #tpu.pipeline_mode<synchronous>, transform_indices = @transform_4, window_bounds = array<i64: 1, 1>}, {transform_indices = @transform_5, window_bounds = array<i64: 1, 128>}]} {
    %c0 = arith.constant 0 : index
    %c0_0 = arith.constant 0 : index
    %0 = vector.load %arg1[%c0, %c0_0] : memref<128x30xf32, #tpu.memory_space<vmem>>, vector<128x30xf32>
    %c0_1 = arith.constant 0 : index
    %c0_2 = arith.constant 0 : index
    %1 = vector.load %arg2[%c0_1, %c0_2] : memref<50x30xf32, #tpu.memory_space<vmem>>, vector<50x30xf32>
    %cst = arith.constant dense<0.000000e+00> : vector<50x128xf32>
    %2 = tpu.matmul %1, %0, %cst {dimension_numbers = #tpu.dot_dimension_numbers<[1], [1], [0], [0], [0, 0, 1, 0], [], []>} : vector<50x30xf32>, vector<128x30xf32>, vector<50x128xf32> -> vector<50x128xf32>
    %c0_3 = arith.constant 0 : index
    %c0_4 = arith.constant 0 : index
    %3 = vector.load %arg3[%c0_3, %c0_4] : memref<50x1xf32, #tpu.memory_space<vmem>>, vector<50x1xf32>
    %4 = vector.broadcast %3 : vector<50x1xf32> to vector<50x128xf32>
    %5 = arith.addf %2, %4 : vector<50x128xf32>
    %cst_5 = arith.constant 0.000000e+00 : f32
    %6 = vector.broadcast %cst_5 : f32 to vector<50x128xf32>
    %7 = arith.maximumf %5, %6 : vector<50x128xf32>
    %c0_6 = arith.constant 0 : index
    %c0_7 = arith.constant 0 : index
    %8 = vector.load %arg4[%c0_6, %c0_7] : memref<50x1xf32, #tpu.memory_space<vmem>>, vector<50x1xf32>
    %9 = vector.broadcast %8 : vector<50x1xf32> to vector<50x128xf32>
    %10 = arith.mulf %7, %9 : vector<50x128xf32>
    %cst_8 = arith.constant dense<0.000000e+00> : vector<128xf32>
    %11 = vector.multi_reduction <add>, %10, %cst_8 [0] : vector<50x128xf32> to vector<128xf32>
    %12 = vector.shape_cast %11 : vector<128xf32> to vector<1x128xf32>
    %c0_9 = arith.constant 0 : index
    %c0_10 = arith.constant 0 : index
    %13 = vector.load %arg5[%c0_9, %c0_10] : memref<1x1xf32, #tpu.memory_space<vmem>>, vector<1x1xf32>
    %14 = vector.broadcast %13 : vector<1x1xf32> to vector<1x128xf32>
    %15 = arith.addf %12, %14 : vector<1x128xf32>
    %cst_11 = arith.constant 0.000000e+00 : f32
    %16 = vector.broadcast %cst_11 : f32 to vector<1x128xf32>
    %17 = arith.maximumf %15, %16 : vector<1x128xf32>
    %c0_12 = arith.constant 0 : index
    %c0_13 = arith.constant 0 : index
    %18 = vector.load %arg6[%c0_12, %c0_13] : memref<1x128xf32, #tpu.memory_space<vmem>>, vector<1x128xf32>
    tpu.vector_store %arg6[%c0_12, %c0_13], %17 {strides = array<i32>} : memref<1x128xf32, #tpu.memory_space<vmem>>, vector<1x128xf32>,
    return
  }
  func.func @transform_0(%arg0: i32) -> (i32, i32) {
    %c0_i32 = arith.constant 0 : i32
    %c0_i32_0 = arith.constant 0 : i32
    return %arg0, %c0_i32 : i32, i32
  }
  func.func @transform_1(%arg0: i32) -> (i32, i32) {
    %c0_i32 = arith.constant 0 : i32
    %c0_i32_0 = arith.constant 0 : i32
    %c0_i32_1 = arith.constant 0 : i32
    return %c0_i32, %c0_i32_0 : i32, i32
  }
  func.func @transform_2(%arg0: i32) -> (i32, i32) {
    %c0_i32 = arith.constant 0 : i32
    %c0_i32_0 = arith.constant 0 : i32
    %c0_i32_1 = arith.constant 0 : i32
    return %c0_i32, %c0_i32_0 : i32, i32
  }
  func.func @transform_3(%arg0: i32) -> (i32, i32) {
    %c0_i32 = arith.constant 0 : i32
    %c0_i32_0 = arith.constant 0 : i32
    %c0_i32_1 = arith.constant 0 : i32
    return %c0_i32, %c0_i32_0 : i32, i32
  }
  func.func @transform_4(%arg0: i32) -> (i32, i32) {
    %c0_i32 = arith.constant 0 : i32
    %c0_i32_0 = arith.constant 0 : i32
    %c0_i32_1 = arith.constant 0 : i32
    return %c0_i32, %c0_i32_0 : i32, i32
  }
  func.func @transform_5(%arg0: i32) -> (i32, i32) {
    %c0_i32 = arith.constant 0 : i32
    %c0_i32_0 = arith.constant 0 : i32
    return %c0_i32, %arg0 : i32, i32
  }
}

</mosaic_0001>

<llo_original>
// kernel: tpu_custom_call.1
$region0: #{tpu_custom_call.1}
  #allocation0 [shape = 'u32[]', space=smem, size = 0x4, offset = 0x4, fixed_abs, tag = 'smem constant byte address 0x4 - core index']
  #allocation1 [shape = 'u32[72,128]{1,0:T(1,128)}', space=vmem, size = 0x9000, scoped, tag = 'internal scratch']
  #allocation2 [shape = 'f32[1,1]{1,0:T(1,128)S(1)}', space=vmem, size = 0x200, scoped, tag = 'scoped memory for tpu_custom_call.1']
  %s0 = inlined_call_operand.vmem [shape: f32[8,30], index: 0, kind: input, shape index: {}]
  %s1 = inlined_call_operand.vmem [shape: f32[50,30], index: 1, kind: input, shape index: {}]
  %s2 = inlined_call_operand.vmem [shape: f32[50,1], index: 2, kind: input, shape index: {}]
  %s3 = inlined_call_operand.vmem [shape: f32[50,1], index: 3, kind: input, shape index: {}]
  %s4 = inlined_call_operand.<no memory space> [shape: f32[1,1], index: 4, kind: input, shape index: {}]
  %s5 = inlined_call_operand.hbm [shape: f32[1,8], index: 5, kind: output, shape index: {}]
  %s6 = sld [smem:[#allocation0]]
  $region30: #{tpu_custom_call.1} parent=0
    _
  %s8 = ssub.s32 1, %s6
  %s9 = scalar_select 0, %s8, %s6
  %v10 = vstv %s4
  %11 = vst [vmem:[#allocation2] sm:$0x1] %v10
  $region1: #{tpu_custom_call.1} parent=0
    #allocation3 [shape = 'u8[512]{0}', space=vmem, size = 0x400, scoped, tag = 'output window, operand 0, single buffered']
    #allocation4 [shape = 's32[1]{0}', space=sflag, size = 0x4, scoped, tag = 'scoped memory for tpu_custom_call.1']
    %12 = vsyncpa [#allocation4], 0
    // Predicated region
    $region2: #{tpu_custom_call.1} parent=1 // pred_check
      _
    $region3: #{tpu_custom_call.1} parent=1 // pred_check_branch
      %14 = sbr.rel (0) target = $region5
    $region4: #{tpu_custom_call.1} parent=1 // pred_region
      _
    $region5: #{tpu_custom_call.1} parent=1 // pred_fallthru
      _
    // Predicated region
    $region6: #{tpu_custom_call.1} parent=1 // pred_check
      _
    $region7: #{tpu_custom_call.1} parent=1 // pred_check_branch
      %16 = sbr.rel (0) target = $region9
    $region8: #{tpu_custom_call.1} parent=1 // pred_region
      _
    $region9: #{tpu_custom_call.1} parent=1 // pred_fallthru
      _
    // Predicated region
    $region10: #{tpu_custom_call.1} parent=1 // pred_check
      _
    $region11: #{tpu_custom_call.1} parent=1 // pred_check_branch
      %18 = sbr.rel (0) target = $region13
    $region12: #{tpu_custom_call.1} parent=1 // pred_region
      _
    $region13: #{tpu_custom_call.1} parent=1 // pred_fallthru
      _
    // Predicated region
    $region14: #{tpu_custom_call.1} parent=1 // pred_check
      _
    $region15: #{tpu_custom_call.1} parent=1 // pred_check_branch
      %20 = sbr.rel (0) target = $region17
    $region16: #{tpu_custom_call.1} parent=1 // pred_region
      _
    $region17: #{tpu_custom_call.1} parent=1 // pred_fallthru
      _
    // Predicated region
    $region18: #{tpu_custom_call.1} parent=1 // pred_check
      _
    $region19: #{tpu_custom_call.1} parent=1 // pred_check_branch
      %22 = sbr.rel (0) target = $region21
    $region20: #{tpu_custom_call.1} parent=1 // pred_region
      _
    $region21: #{tpu_custom_call.1} parent=1 // pred_fallthru
      _
    %v23 = vld [vmem:[%s0] sm:$0xff]
    %v24 = vld [vmem:[%s0 + $0x8] sm:$0xff]
    %v25 = vld [vmem:[%s0 + $0x10] sm:$0xff]
    %v26 = vld [vmem:[%s0 + $0x18] sm:$0xff]
    %v27 = vld [vmem:[%s0 + $0x20] sm:$0xff]
    %v28 = vld [vmem:[%s0 + $0x28] sm:$0xff]
    %v29 = vld [vmem:[%s0 + $0x30] sm:$0xff]
    %v30 = vld [vmem:[%s0 + $0x38] sm:$0xff]
    %v31 = vld [vmem:[%s0 + $0x40] sm:$0xff]
    %v32 = vld [vmem:[%s0 + $0x48] sm:$0xff]
    %v33 = vld [vmem:[%s0 + $0x50] sm:$0xff]
    %v34 = vld [vmem:[%s0 + $0x58] sm:$0xff]
    %v35 = vld [vmem:[%s0 + $0x60] sm:$0xff]
    %v36 = vld [vmem:[%s0 + $0x68] sm:$0xff]
    %v37 = vld [vmem:[%s0 + $0x70] sm:$0xff]
    %v38 = vld [vmem:[%s0 + $0x78] sm:$0xff]
    %v39 = vld [vmem:[%s1] sm:$0xff]
    %v40 = vld [vmem:[%s1 + $0x8] sm:$0xff]
    %v41 = vld [vmem:[%s1 + $0x10] sm:$0xff]
    %v42 = vld [vmem:[%s1 + $0x18] sm:$0xff]
    %v43 = vld [vmem:[%s1 + $0x20] sm:$0xff]
    %v44 = vld [vmem:[%s1 + $0x28] sm:$0xff]
    %v45 = vld [vmem:[%s1 + $0x30] sm:$0x3]
    %v46 = vld [vmem:[%s2] sm:$0xff]
    %v47 = vld [vmem:[%s2 + $0x8] sm:$0xff]
    %v48 = vld [vmem:[%s2 + $0x10] sm:$0xff]
    %v49 = vld [vmem:[%s2 + $0x18] sm:$0xff]
    %v50 = vld [vmem:[%s2 + $0x20] sm:$0xff]
    %v51 = vld [vmem:[%s2 + $0x28] sm:$0xff]
    %v52 = vld [vmem:[%s2 + $0x30] sm:$0x3]
    %54 = vset.pattern.permute.xlu0 0
    %55 = vperm.xlu0 %54, %v46
    %v56 = vpop.permute.xlu0 %55
    %59 = vset.pattern.permute.xlu0 0
    %60 = vperm.xlu0 %59, %v47
    %v61 = vpop.permute.xlu0 %60
    %64 = vset.pattern.permute.xlu0 0
    %65 = vperm.xlu0 %64, %v48
    %v66 = vpop.permute.xlu0 %65
    %69 = vset.pattern.permute.xlu0 0
    %70 = vperm.xlu0 %69, %v49
    %v71 = vpop.permute.xlu0 %70
    %74 = vset.pattern.permute.xlu0 0
    %75 = vperm.xlu0 %74, %v50
    %v76 = vpop.permute.xlu0 %75
    %79 = vset.pattern.permute.xlu0 0
    %80 = vperm.xlu0 %79, %v51
    %v81 = vpop.permute.xlu0 %80
    %84 = vset.pattern.permute.xlu0 0
    %85 = vperm.xlu0 %84, %v52
    %v86 = vpop.permute.xlu0 %85
    %vm88 = vcmask 244736
    %v90 = vsel %vm88, %v39, 0
    %v93 = vsel %vm88, %v40, 0
    %v96 = vsel %vm88, %v41, 0
    %v99 = vsel %vm88, %v42, 0
    %v102 = vsel %vm88, %v43, 0
    %v105 = vsel %vm88, %v44, 0
    %v108 = vsel %vm88, %v45, 0
    %v111 = vsel %vm88, %v23, 0
    %v114 = vsel %vm88, %v24, 0
    %v117 = vsel %vm88, %v25, 0
    %v120 = vsel %vm88, %v26, 0
    %v123 = vsel %vm88, %v27, 0
    %v126 = vsel %vm88, %v28, 0
    %v129 = vsel %vm88, %v29, 0
    %v132 = vsel %vm88, %v30, 0
    %v135 = vsel %vm88, %v31, 0
    %v138 = vsel %vm88, %v32, 0
    %v141 = vsel %vm88, %v33, 0
    %v144 = vsel %vm88, %v34, 0
    %v147 = vsel %vm88, %v35, 0
    %v150 = vsel %vm88, %v36, 0
    %v153 = vsel %vm88, %v37, 0
    %v156 = vsel %vm88, %v38, 0
    %158 = vmatpush.xpose.msra.mxu0 %v156
    %159 = vmatpush.xpose.msra.mxu0 %v153
    %160 = vmatpush.xpose.msra.mxu0 %v150
    %161 = vmatpush.xpose.msra.mxu0 %v147
    %162 = vmatpush.xpose.msra.mxu0 %v144
    %163 = vmatpush.xpose.msra.mxu0 %v141
    %164 = vmatpush.xpose.msra.mxu0 %v138
    %165 = vmatpush.xpose.msra.mxu0 %v135
    %166 = vmatpush.xpose.msra.mxu0 %v132
    %167 = vmatpush.xpose.msra.mxu0 %v129
    %168 = vmatpush.xpose.msra.mxu0 %v126
    %169 = vmatpush.xpose.msra.mxu0 %v123
    %170 = vmatpush.xpose.msra.mxu0 %v120
    %171 = vmatpush.xpose.msra.mxu0 %v117
    %172 = vmatpush.xpose.msra.mxu0 %v114
    %173 = vmatpush.xpose.msra.mxu0 %v111
    %174 = vmatmul.f32.gmra.mxu0 %v90
    %v175 = vpop.f32.mrf.mxu0
    %v176 = vadd.f32 %v56, %v175
    %177 = vmatmul.f32.gmra.mxu0 %v93
    %v178 = vpop.f32.mrf.mxu0
    %v179 = vadd.f32 %v61, %v178
    %180 = vmatmul.f32.gmra.mxu0 %v96
    %v181 = vpop.f32.mrf.mxu0
    %v182 = vadd.f32 %v66, %v181
    %183 = vmatmul.f32.gmra.mxu0 %v99
    %v184 = vpop.f32.mrf.mxu0
    %v185 = vadd.f32 %v71, %v184
    %186 = vmatmul.f32.gmra.mxu0 %v102
    %v187 = vpop.f32.mrf.mxu0
    %v188 = vadd.f32 %v76, %v187
    %189 = vmatmul.f32.gmra.mxu0 %v105
    %v190 = vpop.f32.mrf.mxu0
    %v191 = vadd.f32 %v81, %v190
    %192 = vmatmul.f32.gmra.mxu0 %v108
    %v193 = vpop.f32.mrf.mxu0
    %v194 = vadd.f32 %v86, %v193
    %195 = vdwg.mxu0
    %v196 = vmax.f32 %v176, 0.0
    %v197 = vmax.f32 %v179, 0.0
    %v198 = vmax.f32 %v182, 0.0
    %v199 = vmax.f32 %v185, 0.0
    %v200 = vmax.f32 %v188, 0.0
    %v201 = vmax.f32 %v191, 0.0
    %v202 = vmax.f32 %v194, 0.0
    %v203 = vld [vmem:[%s3] sm:$0xff]
    %v204 = vld [vmem:[%s3 + $0x8] sm:$0xff]
    %v205 = vld [vmem:[%s3 + $0x10] sm:$0xff]
    %v206 = vld [vmem:[%s3 + $0x18] sm:$0xff]
    %v207 = vld [vmem:[%s3 + $0x20] sm:$0xff]
    %v208 = vld [vmem:[%s3 + $0x28] sm:$0xff]
    %v209 = vld [vmem:[%s3 + $0x30] sm:$0x3]
    %211 = vset.pattern.permute.xlu0 0
    %212 = vperm.xlu0 %211, %v203
    %v213 = vpop.permute.xlu0 %212
    %216 = vset.pattern.permute.xlu0 0
    %217 = vperm.xlu0 %216, %v204
    %v218 = vpop.permute.xlu0 %217
    %221 = vset.pattern.permute.xlu0 0
    %222 = vperm.xlu0 %221, %v205
    %v223 = vpop.permute.xlu0 %222
    %226 = vset.pattern.permute.xlu0 0
    %227 = vperm.xlu0 %226, %v206
    %v228 = vpop.permute.xlu0 %227
    %231 = vset.pattern.permute.xlu0 0
    %232 = vperm.xlu0 %231, %v207
    %v233 = vpop.permute.xlu0 %232
    %236 = vset.pattern.permute.xlu0 0
    %237 = vperm.xlu0 %236, %v208
    %v238 = vpop.permute.xlu0 %237
    %241 = vset.pattern.permute.xlu0 0
    %242 = vperm.xlu0 %241, %v209
    %v243 = vpop.permute.xlu0 %242
    %v245 = vmul.f32 %v196, %v213
    %v246 = vmul.f32 %v197, %v218
    %v247 = vmul.f32 %v198, %v223
    %v248 = vmul.f32 %v199, %v228
    %v249 = vmul.f32 %v200, %v233
    %v250 = vmul.f32 %v201, %v238
    %v251 = vmul.f32 %v202, %v243
    %v252 = vadd.f32 %v245, %v246
    %v253 = vadd.f32 %v252, %v247
    %v254 = vadd.f32 %v253, %v248
    %v255 = vadd.f32 %v254, %v249
    %v256 = vadd.f32 %v255, %v250
    %vm257 = vcmask 1041408
    %v258 = vsel %vm257, %v251, 0.0
    %v259 = vadd.f32 %v256, %v258
    %v260 = vrot.slane %v259, 4
    %v261 = vadd.f32 %v259, %v260
    %v262 = vrot.slane %v261, 2
    %v263 = vadd.f32 %v261, %v262
    %v264 = vrot.slane %v263, 1
    %v265 = vadd.f32 %v263, %v264
    %v266 = vld [vmem:[#allocation2] sm:$0x1]
    %268 = vset.pattern.permute.xlu0 0
    %269 = vperm.xlu0 %268, %v266
    %v270 = vpop.permute.xlu0 %269
    %v272 = vperm.slane %v270, 0
    %v273 = vadd.f32 %v265, %v272
    %v274 = vmax.f32 %v273, 0.0
    %275 = vst [vmem:[#allocation3] sm:$0x1] %v274
    // Predicated region
    $region22: #{tpu_custom_call.1} parent=1 // pred_check
      _
    $region23: #{tpu_custom_call.1} parent=1 // pred_check_branch
      %277 = sbr.rel (0) target = $region25
    $region24: #{tpu_custom_call.1} parent=1 // pred_region
      %279 = vsyncadd [#allocation4], 0
      %s281 = sshll.u32 [#allocation3], 4
      %s282 = int_to_ptr.vmem [resolvable:$true] %s281
      %s283 = sshll.u32 %s5, 4
      %s284 = int_to_ptr.hbm [resolvable:$true] %s283
      %286 = dma.vmem_to_hbm [thread:$0]  %s282, 16, %s284, [#allocation4]
    $region25: #{tpu_custom_call.1} parent=1 // pred_fallthru
      _
    // Predicated region
    $region26: #{tpu_custom_call.1} parent=1 // pred_check
      _
    $region27: #{tpu_custom_call.1} parent=1 // pred_check_branch
      %288 = sbr.rel (0) target = $region29
    $region28: #{tpu_custom_call.1} parent=1 // pred_region
      %290 = dma.done [#allocation4], 16
    $region29: #{tpu_custom_call.1} parent=1 // pred_fallthru
      _
    %291 = vsyncpa [#allocation4], 1

</llo_original>
